<compile_context>
chip_gen: v7x
topology: tpu7x:2x2x1
jax: 0.10.0
libtpu: 0.0.40
codegen_flags: <defaults>
</compile_context>

<pallas_src>
import functools

import jax
import jax.numpy as jnp
from jax.experimental import pallas as pl
from jax.experimental.pallas import tpu as pltpu

IN_DIM = 19
H1 = 128
H2 = 256
OUT_DIM = 50
OUT_PAD = 128              # logits padded to a full 128-lane vreg for the MXU
MAX_TILE_B = 1024          # amortize per-grid-step overhead; ~3 KiB VMEM per row
VMEM_LIMIT = 32 * 1024 * 1024
N_CORE_SPLITS = 2          # v7x has 2 TensorCores; harmless on 1-TC v5e/v6e
STAT_ROWS = 8              # sublane-padded height of each per-core stats block
NEG_FLOOR = -1.0e30        # finite "-inf": keeps the online softmax update NaN-free


def _mlp_logits(x_ref, w1_ref, b1_ref, w2_ref, b2_ref, w3_ref, b3_ref):
    """d1+relu, d2+relu, d3 (dropouts are identity at inference). f32 (rows, OUT_PAD)."""
    h1 = jnp.dot(x_ref[...], w1_ref[...],
                 preferred_element_type=jnp.float32) + b1_ref[...]
    h1 = jnp.maximum(h1, 0.0)
    h2 = jnp.dot(h1.astype(jnp.bfloat16), w2_ref[...],
                 preferred_element_type=jnp.float32) + b2_ref[...]
    h2 = jnp.maximum(h2, 0.0)
    return jnp.dot(h2.astype(jnp.bfloat16), w3_ref[...],
                   preferred_element_type=jnp.float32) + b3_ref[...]


def _resident2(shape):
    """Constant-index (weights/bias) spec for the 2-D pass-1 grid, single-buffered."""
    return pl.BlockSpec(shape, lambda c, t: (0,) * len(shape),
                        pipeline_mode=pl.Buffered(1))


def _resident1(shape):
    """Constant-index spec for the 1-D pass-2 grid, single-buffered."""
    return pl.BlockSpec(shape, lambda t: (0,) * len(shape),
                        pipeline_mode=pl.Buffered(1))


def _stats_kernel(x_ref, w1_ref, b1_ref, w2_ref, b2_ref, w3_ref, b3_ref,
                  m_ref, l_ref, *, batch, tile_b, tiles_per_core,
                  first_masked_tile, total_tiles):
    """Pass 1: per-core online column (dim=0) max / sum-exp of the logits."""
    c = pl.program_id(0)               # core split (parallel on v7x)
    t = pl.program_id(1)               # batch tile within this core's range
    gt = c * tiles_per_core + t        # global batch-tile index (may overflow n_tiles)

    @pl.when(t == 0)
    def _():
        m_ref[...] = jnp.full(m_ref.shape, NEG_FLOOR, m_ref.dtype)
        l_ref[...] = jnp.zeros(l_ref.shape, l_ref.dtype)

    logits = _mlp_logits(x_ref, w1_ref, b1_ref, w2_ref, b2_ref, w3_ref, b3_ref)

    def update(vals):
        m_old = m_ref[...]                                        # (STAT_ROWS, OUT_PAD)
        m_new = jnp.maximum(m_old, jnp.max(vals, axis=0, keepdims=True))
        l_ref[...] = (l_ref[...] * jnp.exp(m_old - m_new)
                      + jnp.sum(jnp.exp(vals - m_new[0:1, :]), axis=0, keepdims=True))
        m_ref[...] = m_new

    if first_masked_tile >= total_tiles:
        # Batch divides evenly into the core x tile grid: no masking anywhere.
        update(logits)
    else:
        @pl.when(gt < first_masked_tile)
        def _():
            update(logits)

        @pl.when(gt >= first_masked_tile)
        def _():
            # Partial / overflow tile: rows at or past `batch` are undefined padding
            # and must not pollute the column statistics.
            row = jax.lax.broadcasted_iota(jnp.int32, (tile_b, 1), 0) + gt * tile_b
            update(jnp.where(row < batch, logits, NEG_FLOOR))


def _normalize_kernel(x_ref, w1_ref, b1_ref, w2_ref, b2_ref, w3_ref, b3_ref,
                      m_ref, l_ref, out_ref):
    """Pass 2: recompute logits, combine per-core stats, softmax over dim=0, write (B,50)."""
    logits = _mlp_logits(x_ref, w1_ref, b1_ref, w2_ref, b2_ref, w3_ref, b3_ref)

    m = m_ref[...]                           # (N_CORE_SPLITS*STAT_ROWS, OUT_PAD)
    l = l_ref[...]
    m0, m1 = m[0:1, :], m[STAT_ROWS:STAT_ROWS + 1, :]
    l0, l1 = l[0:1, :], l[STAT_ROWS:STAT_ROWS + 1, :]
    m_all = jnp.maximum(m0, m1)
    l_all = l0 * jnp.exp(m0 - m_all) + l1 * jnp.exp(m1 - m_all)

    # Exact divide (not approx reciprocal): every column must sum to 1.
    out = jnp.exp(logits - m_all) / l_all
    out_ref[...] = out[:, :OUT_DIM]


def hs_classifier_forward(x, params, *, tile_b=None):
    """x: (B, ...) with prod(...) == 19. params: dict of w1,b1,w2,b2,w3,b3 (f32)."""
    B = x.shape[0]
    x = x.reshape(B, -1)                                   # flatten(start_dim=1)
    assert x.shape[1] == IN_DIM

    if tile_b is None:
        tile_b = B if B <= MAX_TILE_B else MAX_TILE_B
    assert tile_b == B or tile_b % 8 == 0, "tile_b must equal B or be a multiple of 8"

    n_tiles = pl.cdiv(B, tile_b)
    tiles_per_core = pl.cdiv(n_tiles, N_CORE_SPLITS)
    total_tiles = N_CORE_SPLITS * tiles_per_core
    # First global tile whose rows need masking out of the dim=0 statistics.
    first_masked_tile = n_tiles - 1 if (B % tile_b) != 0 else n_tiles

    f32, bf16 = jnp.float32, jnp.bfloat16

    # bf16 matmul operands (f32 accumulation on the MXU); zero-pad layer 3 to 128 lanes.
    xb = x.astype(bf16)
    w1 = params["w1"].astype(bf16)
    w2 = params["w2"].astype(bf16)
    w3 = jnp.zeros((H2, OUT_PAD), bf16).at[:, :OUT_DIM].set(params["w3"].astype(bf16))
    b1 = params["b1"].astype(f32).reshape(1, H1)
    b2 = params["b2"].astype(f32).reshape(1, H2)
    b3 = jnp.zeros((1, OUT_PAD), f32).at[:, :OUT_DIM].set(
        params["b3"].astype(f32).reshape(1, OUT_DIM))

    stats_kernel = functools.partial(
        _stats_kernel, batch=B, tile_b=tile_b, tiles_per_core=tiles_per_core,
        first_masked_tile=first_masked_tile, total_tiles=total_tiles)

    stat_shape = (N_CORE_SPLITS * STAT_ROWS, OUT_PAD)

    # ---- Pass 1: per-core partial column max / sum-exp (no logits round-trip). ----
    m, l = pl.pallas_call(
        stats_kernel,
        out_shape=(jax.ShapeDtypeStruct(stat_shape, f32),
                   jax.ShapeDtypeStruct(stat_shape, f32)),
        grid=(N_CORE_SPLITS, tiles_per_core),
        in_specs=[
            # Clamp the global tile index so overflow tiles (odd tile count) never
            # produce an out-of-range block; their rows are fully masked in-kernel.
            pl.BlockSpec((tile_b, IN_DIM),
                         lambda c, t: (jnp.minimum(c * tiles_per_core + t,
                                                   n_tiles - 1), 0)),
            _resident2((IN_DIM, H1)), _resident2((1, H1)),
            _resident2((H1, H2)), _resident2((1, H2)),
            _resident2((H2, OUT_PAD)), _resident2((1, OUT_PAD)),
        ],
        out_specs=(pl.BlockSpec((STAT_ROWS, OUT_PAD), lambda c, t: (c, 0)),
                   pl.BlockSpec((STAT_ROWS, OUT_PAD), lambda c, t: (c, 0))),
        compiler_params=pltpu.CompilerParams(
            dimension_semantics=("parallel", "arbitrary"),   # both v7x TCs on pass 1
            vmem_limit_bytes=VMEM_LIMIT),
    )(xb, w1, b1, w2, b2, w3, b3)

    # ---- Pass 2: recompute logits, combine per-core stats, normalize, write (B,50). ----
    out = pl.pallas_call(
        _normalize_kernel,
        out_shape=jax.ShapeDtypeStruct((B, OUT_DIM), f32),
        grid=(n_tiles,),
        in_specs=[
            pl.BlockSpec((tile_b, IN_DIM), lambda t: (t, 0)),
            _resident1((IN_DIM, H1)), _resident1((1, H1)),
            _resident1((H1, H2)), _resident1((1, H2)),
            _resident1((H2, OUT_PAD)), _resident1((1, OUT_PAD)),
            _resident1(stat_shape), _resident1(stat_shape),
        ],
        out_specs=pl.BlockSpec((tile_b, OUT_DIM), lambda t: (t, 0)),
        compiler_params=pltpu.CompilerParams(
            dimension_semantics=("parallel",),
            vmem_limit_bytes=VMEM_LIMIT),
    )(xb, w1, b1, w2, b2, w3, b3, m, l)

    return out


def init_params(key):
    """Deterministic init mimicking PyTorch Linear default U[-1/sqrt(fan_in), +]."""
    ks = jax.random.split(key, 6)

    def linear(kw, kb, fan_in, fan_out):
        bound = 1.0 / jnp.sqrt(jnp.float32(fan_in))
        w = jax.random.uniform(kw, (fan_in, fan_out), jnp.float32, -bound, bound)
        b = jax.random.uniform(kb, (1, fan_out), jnp.float32, -bound, bound)
        return w, b

    w1, b1 = linear(ks[0], ks[1], IN_DIM, H1)
    w2, b2 = linear(ks[2], ks[3], H1, H2)
    w3, b3 = linear(ks[4], ks[5], H2, OUT_DIM)
    return {"w1": w1, "b1": b1, "w2": w2, "b2": b2, "w3": w3, "b3": b3}


def _reference_forward(x, params):
    h1 = jnp.maximum(x @ params["w1"] + params["b1"], 0.0)
    h2 = jnp.maximum(h1 @ params["w2"] + params["b2"], 0.0)
    logits = h2 @ params["w3"] + params["b3"]
    return jax.nn.softmax(logits, axis=0)          # softmax over dim=0 (batch)


if __name__ == "__main__":
    key = jax.random.PRNGKey(0)
    k_param, k_x = jax.random.split(key)
    params = init_params(k_param)

    B = 20                                               # small demo batch
    x = jax.random.normal(k_x, (B, IN_DIM), jnp.float32)
    ref = _reference_forward(x, params)

    # Multi-tile path: 3 tiles of 8 rows (last partial) + the odd-tile-count
    # overflow tile on the per-core split -> both masked paths exercised.
    out = jax.block_until_ready(hs_classifier_forward(x, params, tile_b=8))
    assert out.shape == (B, OUT_DIM)
    assert jnp.allclose(out, ref, atol=1e-2, rtol=1e-2), "multi-tile mismatch"
    # softmax over dim=0: every column sums to 1 over the batch axis
    assert jnp.allclose(jnp.sum(out, axis=0), jnp.ones((OUT_DIM,)), atol=1e-3), \
        "column sums != 1"

    # Single-tile path (default tile_b = B).
    out1 = jax.block_until_ready(hs_classifier_forward(x, params))
    assert jnp.allclose(out1, ref, atol=1e-2, rtol=1e-2), "single-tile mismatch"
    assert jnp.allclose(jnp.sum(out1, axis=0), jnp.ones((OUT_DIM,)), atol=1e-3)

    print("KERNEL_OK")
</pallas_src>

<mosaic_0001>
module attributes {stable_mosaic.version = 11 : i64} {
  func.func @_stats_kernel(%arg0: i32, %arg1: i32, %arg2: memref<8x19xbf16, #tpu.memory_space<vmem>>, %arg3: memref<19x128xbf16, #tpu.memory_space<vmem>>, %arg4: memref<1x128xf32, #tpu.memory_space<vmem>>, %arg5: memref<128x256xbf16, #tpu.memory_space<vmem>>, %arg6: memref<1x256xf32, #tpu.memory_space<vmem>>, %arg7: memref<256x128xbf16, #tpu.memory_space<vmem>>, %arg8: memref<1x128xf32, #tpu.memory_space<vmem>>, %arg9: memref<8x128xf32, #tpu.memory_space<vmem>>, %arg10: memref<8x128xf32, #tpu.memory_space<vmem>>) attributes {dimension_semantics = [#tpu.dimension_semantics<parallel>, #tpu.dimension_semantics<arbitrary>], iteration_bounds = array<i64: 2, 2>, scalar_prefetch = 0 : i64, scratch_operands = 0 : i64, tpu.core_type = #tpu.core_type<tc>, window_params = [{transform_indices = @transform_0, window_bounds = array<i64: 8, 19>}, {pipeline_mode = #tpu.pipeline_mode<synchronous>, transform_indices = @transform_1, window_bounds = array<i64: 19, 128>}, {pipeline_mode = #tpu.pipeline_mode<synchronous>, transform_indices = @transform_2, window_bounds = array<i64: 1, 128>}, {pipeline_mode = #tpu.pipeline_mode<synchronous>, transform_indices = @transform_3, window_bounds = array<i64: 128, 256>}, {pipeline_mode = #tpu.pipeline_mode<synchronous>, transform_indices = @transform_4, window_bounds = array<i64: 1, 256>}, {pipeline_mode = #tpu.pipeline_mode<synchronous>, transform_indices = @transform_5, window_bounds = array<i64: 256, 128>}, {pipeline_mode = #tpu.pipeline_mode<synchronous>, transform_indices = @transform_6, window_bounds = array<i64: 1, 128>}, {transform_indices = @transform_7, window_bounds = array<i64: 8, 128>}, {transform_indices = @transform_8, window_bounds = array<i64: 8, 128>}]} {
    %c2_i32 = arith.constant 2 : i32
    %0 = arith.muli %arg0, %c2_i32 : i32
    %1 = arith.addi %0, %arg1 : i32
    %c0_i32 = arith.constant 0 : i32
    %2 = arith.cmpi eq, %arg1, %c0_i32 : i32
    %3 = arith.extui %2 : i1 to i32
    %c0_i32_0 = arith.constant 0 : i32
    %4 = arith.cmpi ne, %3, %c0_i32_0 : i32
    scf.if %4 {
      %cst_22 = arith.constant -1.000000e+30 : f32
      %33 = vector.broadcast %cst_22 : f32 to vector<8x128xf32>
      %c0_23 = arith.constant 0 : index
      %c0_24 = arith.constant 0 : index
      %34 = vector.load %arg9[%c0_23, %c0_24] : memref<8x128xf32, #tpu.memory_space<vmem>>, vector<8x128xf32>
      tpu.vector_store %arg9[%c0_23, %c0_24], %33 {strides = array<i32>} : memref<8x128xf32, #tpu.memory_space<vmem>>, vector<8x128xf32>,
      %cst_25 = arith.constant 0.000000e+00 : f32
      %35 = vector.broadcast %cst_25 : f32 to vector<8x128xf32>
      %c0_26 = arith.constant 0 : index
      %c0_27 = arith.constant 0 : index
      %36 = vector.load %arg10[%c0_26, %c0_27] : memref<8x128xf32, #tpu.memory_space<vmem>>, vector<8x128xf32>
      tpu.vector_store %arg10[%c0_26, %c0_27], %35 {strides = array<i32>} : memref<8x128xf32, #tpu.memory_space<vmem>>, vector<8x128xf32>,
    } else {
    }
    %c0 = arith.constant 0 : index
    %c0_1 = arith.constant 0 : index
    %5 = vector.load %arg2[%c0, %c0_1] : memref<8x19xbf16, #tpu.memory_space<vmem>>, vector<8x19xbf16>
    %c0_2 = arith.constant 0 : index
    %c0_3 = arith.constant 0 : index
    %6 = vector.load %arg3[%c0_2, %c0_3] : memref<19x128xbf16, #tpu.memory_space<vmem>>, vector<19x128xbf16>
    %cst = arith.constant dense<0.000000e+00> : vector<8x128xf32>
    %7 = tpu.matmul %5, %6, %cst {dimension_numbers = #tpu.dot_dimension_numbers<[1], [0], [0], [1], [0, 0, 1, 1], [], []>} : vector<8x19xbf16>, vector<19x128xbf16>, vector<8x128xf32> -> vector<8x128xf32>
    %c0_4 = arith.constant 0 : index
    %c0_5 = arith.constant 0 : index
    %8 = vector.load %arg4[%c0_4, %c0_5] : memref<1x128xf32, #tpu.memory_space<vmem>>, vector<1x128xf32>
    %9 = vector.broadcast %8 : vector<1x128xf32> to vector<8x128xf32>
    %10 = arith.addf %7, %9 : vector<8x128xf32>
    %cst_6 = arith.constant 0.000000e+00 : f32
    %11 = vector.broadcast %cst_6 : f32 to vector<8x128xf32>
    %12 = arith.maximumf %10, %11 : vector<8x128xf32>
    %13 = arith.truncf %12 : vector<8x128xf32> to vector<8x128xbf16>
    %c0_7 = arith.constant 0 : index
    %c0_8 = arith.constant 0 : index
    %14 = vector.load %arg5[%c0_7, %c0_8] : memref<128x256xbf16, #tpu.memory_space<vmem>>, vector<128x256xbf16>
    %cst_9 = arith.constant dense<0.000000e+00> : vector<8x256xf32>
    %15 = tpu.matmul %13, %14, %cst_9 {dimension_numbers = #tpu.dot_dimension_numbers<[1], [0], [0], [1], [0, 0, 1, 1], [], []>} : vector<8x128xbf16>, vector<128x256xbf16>, vector<8x256xf32> -> vector<8x256xf32>
    %c0_10 = arith.constant 0 : index
    %c0_11 = arith.constant 0 : index
    %16 = vector.load %arg6[%c0_10, %c0_11] : memref<1x256xf32, #tpu.memory_space<vmem>>, vector<1x256xf32>
    %17 = vector.broadcast %16 : vector<1x256xf32> to vector<8x256xf32>
    %18 = arith.addf %15, %17 : vector<8x256xf32>
    %cst_12 = arith.constant 0.000000e+00 : f32
    %19 = vector.broadcast %cst_12 : f32 to vector<8x256xf32>
    %20 = arith.maximumf %18, %19 : vector<8x256xf32>
    %21 = arith.truncf %20 : vector<8x256xf32> to vector<8x256xbf16>
    %c0_13 = arith.constant 0 : index
    %c0_14 = arith.constant 0 : index
    %22 = vector.load %arg7[%c0_13, %c0_14] : memref<256x128xbf16, #tpu.memory_space<vmem>>, vector<256x128xbf16>
    %cst_15 = arith.constant dense<0.000000e+00> : vector<8x128xf32>
    %23 = tpu.matmul %21, %22, %cst_15 {dimension_numbers = #tpu.dot_dimension_numbers<[1], [0], [0], [1], [0, 0, 1, 1], [], []>} : vector<8x256xbf16>, vector<256x128xbf16>, vector<8x128xf32> -> vector<8x128xf32>
    %c0_16 = arith.constant 0 : index
    %c0_17 = arith.constant 0 : index
    %24 = vector.load %arg8[%c0_16, %c0_17] : memref<1x128xf32, #tpu.memory_space<vmem>>, vector<1x128xf32>
    %25 = vector.broadcast %24 : vector<1x128xf32> to vector<8x128xf32>
    %26 = arith.addf %23, %25 : vector<8x128xf32>
    %c2_i32_18 = arith.constant 2 : i32
    %27 = arith.cmpi slt, %1, %c2_i32_18 : i32
    %28 = arith.extui %27 : i1 to i32
    %c0_i32_19 = arith.constant 0 : i32
    %29 = arith.cmpi ne, %28, %c0_i32_19 : i32
    scf.if %29 {
      %c0_22 = arith.constant 0 : index
      %c0_23 = arith.constant 0 : index
      %33 = vector.load %arg9[%c0_22, %c0_23] : memref<8x128xf32, #tpu.memory_space<vmem>>, vector<8x128xf32>
      %cst_24 = arith.constant dense<0xFF800000> : vector<128xf32>
      %34 = vector.multi_reduction <maximumf>, %26, %cst_24 [0] : vector<8x128xf32> to vector<128xf32>
      %35 = vector.shape_cast %34 : vector<128xf32> to vector<1x128xf32>
      %36 = vector.broadcast %35 : vector<1x128xf32> to vector<8x128xf32>
      %37 = arith.maximumf %33, %36 : vector<8x128xf32>
      %c0_25 = arith.constant 0 : index
      %c0_26 = arith.constant 0 : index
      %38 = vector.load %arg10[%c0_25, %c0_26] : memref<8x128xf32, #tpu.memory_space<vmem>>, vector<8x128xf32>
      %39 = arith.subf %33, %37 : vector<8x128xf32>
      %40 = math.exp %39 : vector<8x128xf32>
      %41 = arith.mulf %38, %40 : vector<8x128xf32>
      %42 = vector.extract_strided_slice %37 {offsets = [0, 0], sizes = [1, 128], strides = [1, 1]} : vector<8x128xf32> to vector<1x128xf32>
      %43 = vector.broadcast %42 : vector<1x128xf32> to vector<8x128xf32>
      %44 = arith.subf %26, %43 : vector<8x128xf32>
      %45 = math.exp %44 : vector<8x128xf32>
      %cst_27 = arith.constant dense<0.000000e+00> : vector<128xf32>
      %46 = vector.multi_reduction <add>, %45, %cst_27 [0] : vector<8x128xf32> to vector<128xf32>
      %47 = vector.shape_cast %46 : vector<128xf32> to vector<1x128xf32>
      %48 = vector.broadcast %47 : vector<1x128xf32> to vector<8x128xf32>
      %49 = arith.addf %41, %48 : vector<8x128xf32>
      %c0_28 = arith.constant 0 : index
      %c0_29 = arith.constant 0 : index
      %50 = vector.load %arg10[%c0_28, %c0_29] : memref<8x128xf32, #tpu.memory_space<vmem>>, vector<8x128xf32>
      tpu.vector_store %arg10[%c0_28, %c0_29], %49 {strides = array<i32>} : memref<8x128xf32, #tpu.memory_space<vmem>>, vector<8x128xf32>,
      %c0_30 = arith.constant 0 : index
      %c0_31 = arith.constant 0 : index
      %51 = vector.load %arg9[%c0_30, %c0_31] : memref<8x128xf32, #tpu.memory_space<vmem>>, vector<8x128xf32>
      tpu.vector_store %arg9[%c0_30, %c0_31], %37 {strides = array<i32>} : memref<8x128xf32, #tpu.memory_space<vmem>>, vector<8x128xf32>,
    } else {
    }
    %c2_i32_20 = arith.constant 2 : i32
    %30 = arith.cmpi sge, %1, %c2_i32_20 : i32
    %31 = arith.extui %30 : i1 to i32
    %c0_i32_21 = arith.constant 0 : i32
    %32 = arith.cmpi ne, %31, %c0_i32_21 : i32
    scf.if %32 {
      %33 = tpu.iota {dimensions = array<i32: 0>} : vector<8x1xi32>
      %c8_i32 = arith.constant 8 : i32
      %34 = arith.muli %1, %c8_i32 : i32
      %35 = vector.broadcast %34 : i32 to vector<8x1xi32>
      %36 = arith.addi %33, %35 : vector<8x1xi32>
      %c20_i32 = arith.constant 20 : i32
      %37 = vector.broadcast %c20_i32 : i32 to vector<8x1xi32>
      %38 = arith.cmpi slt, %36, %37 : vector<8x1xi32>
      %cst_22 = arith.constant -1.000000e+30 : f32
      %39 = vector.shape_cast %38 : vector<8x1xi1> to vector<8x1xi1>
      %40 = vector.broadcast %39 : vector<8x1xi1> to vector<8x128xi1>
      %41 = vector.broadcast %cst_22 : f32 to vector<8x128xf32>
      %42 = arith.select %40, %26, %41 : vector<8x128xi1>, vector<8x128xf32>
      %c0_23 = arith.constant 0 : index
      %c0_24 = arith.constant 0 : index
      %43 = vector.load %arg9[%c0_23, %c0_24] : memref<8x128xf32, #tpu.memory_space<vmem>>, vector<8x128xf32>
      %cst_25 = arith.constant dense<0xFF800000> : vector<128xf32>
      %44 = vector.multi_reduction <maximumf>, %42, %cst_25 [0] : vector<8x128xf32> to vector<128xf32>
      %45 = vector.shape_cast %44 : vector<128xf32> to vector<1x128xf32>
      %46 = vector.broadcast %45 : vector<1x128xf32> to vector<8x128xf32>
      %47 = arith.maximumf %43, %46 : vector<8x128xf32>
      %c0_26 = arith.constant 0 : index
      %c0_27 = arith.constant 0 : index
      %48 = vector.load %arg10[%c0_26, %c0_27] : memref<8x128xf32, #tpu.memory_space<vmem>>, vector<8x128xf32>
      %49 = arith.subf %43, %47 : vector<8x128xf32>
      %50 = math.exp %49 : vector<8x128xf32>
      %51 = arith.mulf %48, %50 : vector<8x128xf32>
      %52 = vector.extract_strided_slice %47 {offsets = [0, 0], sizes = [1, 128], strides = [1, 1]} : vector<8x128xf32> to vector<1x128xf32>
      %53 = vector.broadcast %52 : vector<1x128xf32> to vector<8x128xf32>
      %54 = arith.subf %42, %53 : vector<8x128xf32>
      %55 = math.exp %54 : vector<8x128xf32>
      %cst_28 = arith.constant dense<0.000000e+00> : vector<128xf32>
      %56 = vector.multi_reduction <add>, %55, %cst_28 [0] : vector<8x128xf32> to vector<128xf32>
      %57 = vector.shape_cast %56 : vector<128xf32> to vector<1x128xf32>
      %58 = vector.broadcast %57 : vector<1x128xf32> to vector<8x128xf32>
      %59 = arith.addf %51, %58 : vector<8x128xf32>
      %c0_29 = arith.constant 0 : index
      %c0_30 = arith.constant 0 : index
      %60 = vector.load %arg10[%c0_29, %c0_30] : memref<8x128xf32, #tpu.memory_space<vmem>>, vector<8x128xf32>
      tpu.vector_store %arg10[%c0_29, %c0_30], %59 {strides = array<i32>} : memref<8x128xf32, #tpu.memory_space<vmem>>, vector<8x128xf32>,
      %c0_31 = arith.constant 0 : index
      %c0_32 = arith.constant 0 : index
      %61 = vector.load %arg9[%c0_31, %c0_32] : memref<8x128xf32, #tpu.memory_space<vmem>>, vector<8x128xf32>
      tpu.vector_store %arg9[%c0_31, %c0_32], %47 {strides = array<i32>} : memref<8x128xf32, #tpu.memory_space<vmem>>, vector<8x128xf32>,
    } else {
    }
    return
  }
  func.func @transform_0(%arg0: i32, %arg1: i32) -> (i32, i32) {
    %c2_i32 = arith.constant 2 : i32
    %0 = arith.muli %arg0, %c2_i32 : i32
    %1 = arith.addi %0, %arg1 : i32
    %c2_i32_0 = arith.constant 2 : i32
    %2 = arith.minsi %1, %c2_i32_0 : i32
    %c0_i32 = arith.constant 0 : i32
    %c0_i32_1 = arith.constant 0 : i32
    return %2, %c0_i32 : i32, i32
  }
  func.func @transform_1(%arg0: i32, %arg1: i32) -> (i32, i32) {
    %c0_i32 = arith.constant 0 : i32
    %c0_i32_0 = arith.constant 0 : i32
    %c0_i32_1 = arith.constant 0 : i32
    return %c0_i32, %c0_i32_0 : i32, i32
  }
  func.func @transform_2(%arg0: i32, %arg1: i32) -> (i32, i32) {
    %c0_i32 = arith.constant 0 : i32
    %c0_i32_0 = arith.constant 0 : i32
    %c0_i32_1 = arith.constant 0 : i32
    return %c0_i32, %c0_i32_0 : i32, i32
  }
  func.func @transform_3(%arg0: i32, %arg1: i32) -> (i32, i32) {
    %c0_i32 = arith.constant 0 : i32
    %c0_i32_0 = arith.constant 0 : i32
    %c0_i32_1 = arith.constant 0 : i32
    return %c0_i32, %c0_i32_0 : i32, i32
  }
  func.func @transform_4(%arg0: i32, %arg1: i32) -> (i32, i32) {
    %c0_i32 = arith.constant 0 : i32
    %c0_i32_0 = arith.constant 0 : i32
    %c0_i32_1 = arith.constant 0 : i32
    return %c0_i32, %c0_i32_0 : i32, i32
  }
  func.func @transform_5(%arg0: i32, %arg1: i32) -> (i32, i32) {
    %c0_i32 = arith.constant 0 : i32
    %c0_i32_0 = arith.constant 0 : i32
    %c0_i32_1 = arith.constant 0 : i32
    return %c0_i32, %c0_i32_0 : i32, i32
  }
  func.func @transform_6(%arg0: i32, %arg1: i32) -> (i32, i32) {
    %c0_i32 = arith.constant 0 : i32
    %c0_i32_0 = arith.constant 0 : i32
    %c0_i32_1 = arith.constant 0 : i32
    return %c0_i32, %c0_i32_0 : i32, i32
  }
  func.func @transform_7(%arg0: i32, %arg1: i32) -> (i32, i32) {
    %c0_i32 = arith.constant 0 : i32
    %c0_i32_0 = arith.constant 0 : i32
    return %arg0, %c0_i32 : i32, i32
  }
  func.func @transform_8(%arg0: i32, %arg1: i32) -> (i32, i32) {
    %c0_i32 = arith.constant 0 : i32
    %c0_i32_0 = arith.constant 0 : i32
    return %arg0, %c0_i32 : i32, i32
  }
}

</mosaic_0001>

<llo_original>
// kernel: tpu_custom_call.1
$region0: #{tpu_custom_call.1}
  #allocation0 [shape = 'u32[]', space=smem, size = 0x4, offset = 0x4, fixed_abs, tag = 'smem constant byte address 0x4 - core index']
  #allocation1 [shape = 'u32[144,128]{1,0:T(1,128)}', space=vmem, size = 0x12000, scoped, tag = 'internal scratch']
  %s0 = inlined_call_operand.hbm [shape: bf16[20,19], index: 0, kind: input, shape index: {}]
  %s1 = inlined_call_operand.hbm [shape: bf16[19,128], index: 1, kind: input, shape index: {}]
  %s2 = inlined_call_operand.vmem [shape: f32[1,128], index: 2, kind: input, shape index: {}]
  %s3 = inlined_call_operand.hbm [shape: bf16[128,256], index: 3, kind: input, shape index: {}]
  %s4 = inlined_call_operand.vmem [shape: f32[1,256], index: 4, kind: input, shape index: {}]
  %s5 = inlined_call_operand.hbm [shape: bf16[256,128], index: 5, kind: input, shape index: {}]
  %s6 = inlined_call_operand.vmem [shape: f32[1,128], index: 6, kind: input, shape index: {}]
  %s7 = inlined_call_operand.hbm [shape: f32[16,128], index: 7, kind: output, shape index: {0}]
  %s8 = inlined_call_operand.hbm [shape: f32[16,128], index: 8, kind: output, shape index: {1}]
  %9 = xla_tuple %s7, %s8
  %s10 = sld [smem:[#allocation0]]
  $region97: #{tpu_custom_call.1} parent=0
    _
  %s12 = ssub.s32 1, %s10
  %s13 = scalar_select 0, %s12, %s10
  $region1: #{tpu_custom_call.1} parent=0
    #allocation2 [shape = 'u8[4096]{0}', space=vmem, size = 0x1000, scoped, tag = 'input window, operand 0']
    #allocation3 [shape = 's32[2]{0}', space=sflag, size = 0x8, scoped, tag = 'scoped memory for tpu_custom_call.1']
    #allocation4 [shape = 's32[2]{0}', space=sflag, size = 0x8, scoped, tag = 'scoped memory for tpu_custom_call.1']
    #allocation5 [shape = 'u8[6144]{0}', space=vmem, size = 0x1800, scoped, tag = 'input window, operand 1, single buffered']
    #allocation6 [shape = 's32[1]{0}', space=sflag, size = 0x4, scoped, tag = 'scoped memory for tpu_custom_call.1']
    #allocation7 [shape = 'u8[65536]{0}', space=vmem, size = 0x10000, scoped, tag = 'input window, operand 3, single buffered']
    #allocation8 [shape = 'u8[65536]{0}', space=vmem, size = 0x10000, scoped, tag = 'input window, operand 5, single buffered']
    #allocation9 [shape = 's32[1]{0}', space=sflag, size = 0x4, scoped, tag = 'scoped memory for tpu_custom_call.1']
    #allocation10 [shape = 'u8[8192]{0}', space=vmem, size = 0x2000, scoped, tag = 'output window, operand 0']
    #allocation11 [shape = 'u8[8192]{0}', space=vmem, size = 0x2000, scoped, tag = 'output window, operand 1']
    #allocation12 [shape = 's32[2]{0}', space=sflag, size = 0x8, scoped, tag = 'scoped memory for tpu_custom_call.1']
    %14 = vsyncpa [#allocation3], 0
    %s15 = scalar_lea.sflag [#allocation3], 1
    %16 = vsyncpa %s15, 0
    %17 = vsyncpa [#allocation6], 0
    %18 = vsyncpa [#allocation9], 0
    %19 = vsyncpa [#allocation4], 0
    %s20 = scalar_lea.sflag [#allocation4], 1
    %21 = vsyncpa %s20, 0
    %22 = vsyncpa [#allocation12], 0
    %s23 = scalar_lea.sflag [#allocation12], 1
    %24 = vsyncpa %s23, 0
    loop: start=0, step=1, limit=6
    $region2: #{tpu_custom_call.1} parent=1 // loop_pre_header
      _
    $region3: #{tpu_custom_call.1} parent=1 // loop_header
      %s26 = sphi 0, %s30
      %p27 = scmp.ge.s32.totalorder %s26, 6
      %s33 = sphi 0, %s45
      %s34 = sphi 0, %s41
      %s35 = sphi 0, %s33
      %s36 = sphi 0, %s34
      %s37 = sphi 0, %s35
      %s38 = sphi 0, %s36
      %s56 = sphi 0, %s58
      %s59 = sphi 0, %s56
      %s60 = sphi 0, %s59
      %s76 = sphi 0, %s60
      %s80 = sphi 0, %s80
      %s82 = sphi 0, %s80
      %s83 = sphi 0, %s82
      %s97 = sphi 0, %s83
      %s101 = sphi 0, %s101
      %s103 = sphi 0, %s101
      %s104 = sphi 0, %s103
      %s118 = sphi 0, %s104
      %s122 = sphi 0, %s122
      %s124 = sphi 0, %s122
      %s125 = sphi 0, %s124
      %s139 = sphi 0, %s125
      %s143 = sphi 0, %s143
      %s145 = sphi 0, %s143
      %s146 = sphi 0, %s145
      %s160 = sphi 0, %s146
      %s164 = sphi 0, %s164
      %s166 = sphi 0, %s164
      %s167 = sphi 0, %s166
      %s181 = sphi 0, %s167
      %s185 = sphi 0, %s185
      %s187 = sphi 0, %s185
      %s188 = sphi 0, %s187
      %s202 = sphi 0, %s188
      %s208 = sphi 0, %s210
      %s211 = sphi 0, %s208
      %s212 = sphi 0, %s211
      %s228 = sphi 0, %s212
      %s234 = sphi 0, %s236
      %s237 = sphi 0, %s234
      %s238 = sphi 0, %s237
      %s254 = sphi 0, %s238
    $region4: #{tpu_custom_call.1} parent=1 // loop_header_branch
      %29 = sbr.rel (%p27) target = $region8
    $region5: #{tpu_custom_call.1} parent=1 // loop_body
      %s31 = ssub.s32 %s26, 1
      %s32 = ssub.s32 %s26, 2
      %s39 = sadd.s32 1, %s34
      %p40 = scmp.ge.s32.totalorder %s39, 2
      %s41 = scalar_select %p40, 0, %s39
      %s42 = sadd.s32 1, %s33
      %s43 = scalar_select %p40, %s42, %s33
      %p44 = scmp.ge.s32.totalorder %s43, 2
      %s45 = scalar_select %p44, 0, %s43
      %s46 = smul.u32 %s33, 2
      %s47 = sadd.s32 %s46, %s34
      %p48 = scmp.lt.s32.totalorder %s47, 2
      %s49 = scalar_select %p48, %s47, 2
      %s50 = smul.u32 %s45, 2
      %s51 = sadd.s32 %s50, %s41
      %p52 = scmp.lt.s32.totalorder %s51, 2
      %s53 = scalar_select %p52, %s51, 2
      %s54 = ssub.s32 %s49, %s53
      %p55 = scmp.eq.s32.totalorder %s54, 0
      %s57 = sadd.s32 %s56, 1
      %s58 = scalar_select %p55, %s56, %s57
      %p61 = pneg %p55
      %p62 = scmp.eq.s32.totalorder %s26, 3
      %p63 = por %p61, %p62
      %p64 = scmp.ne.s32.totalorder %s56, %s59
      %p65 = scmp.eq.s32.totalorder %s26, 0
      %p66 = por %p64, %p65
      %p67 = scmp.ne.s32.totalorder %s56, %s59
      %p68 = scmp.eq.s32.totalorder %s31, 3
      %p69 = por %p67, %p68
      %p70 = scmp.ne.s32.totalorder %s59, %s60
      %p71 = scmp.eq.s32.totalorder %s31, 0
      %p72 = por %p70, %p71
      %p73 = scmp.ne.s32.totalorder %s59, %s60
      %p74 = scmp.eq.s32.totalorder %s32, 3
      %p75 = por %p73, %p74
      %p77 = scmp.ne.s32.totalorder %s60, %s76
      %p78 = scmp.eq.s32.totalorder %s32, 0
      %p79 = por %p77, %p78
      %s81 = sadd.s32 %s80, 1
      %p84 = scmp.eq.s32.totalorder %s26, 3
      %p85 = scmp.ne.s32.totalorder %s80, %s82
      %p86 = scmp.eq.s32.totalorder %s26, 0
      %p87 = por %p85, %p86
      %p88 = scmp.ne.s32.totalorder %s80, %s82
      %p89 = scmp.eq.s32.totalorder %s31, 3
      %p90 = por %p88, %p89
      %p91 = scmp.ne.s32.totalorder %s82, %s83
      %p92 = scmp.eq.s32.totalorder %s31, 0
      %p93 = por %p91, %p92
      %p94 = scmp.ne.s32.totalorder %s82, %s83
      %p95 = scmp.eq.s32.totalorder %s32, 3
      %p96 = por %p94, %p95
      %p98 = scmp.ne.s32.totalorder %s83, %s97
      %p99 = scmp.eq.s32.totalorder %s32, 0
      %p100 = por %p98, %p99
      %s102 = sadd.s32 %s101, 1
      %p105 = scmp.eq.s32.totalorder %s26, 3
      %p106 = scmp.ne.s32.totalorder %s101, %s103
      %p107 = scmp.eq.s32.totalorder %s26, 0
      %p108 = por %p106, %p107
      %p109 = scmp.ne.s32.totalorder %s101, %s103
      %p110 = scmp.eq.s32.totalorder %s31, 3
      %p111 = por %p109, %p110
      %p112 = scmp.ne.s32.totalorder %s103, %s104
      %p113 = scmp.eq.s32.totalorder %s31, 0
      %p114 = por %p112, %p113
      %p115 = scmp.ne.s32.totalorder %s103, %s104
      %p116 = scmp.eq.s32.totalorder %s32, 3
      %p117 = por %p115, %p116
      %p119 = scmp.ne.s32.totalorder %s104, %s118
      %p120 = scmp.eq.s32.totalorder %s32, 0
      %p121 = por %p119, %p120
      %s123 = sadd.s32 %s122, 1
      %p126 = scmp.eq.s32.totalorder %s26, 3
      %p127 = scmp.ne.s32.totalorder %s122, %s124
      %p128 = scmp.eq.s32.totalorder %s26, 0
      %p129 = por %p127, %p128
      %p130 = scmp.ne.s32.totalorder %s122, %s124
      %p131 = scmp.eq.s32.totalorder %s31, 3
      %p132 = por %p130, %p131
      %p133 = scmp.ne.s32.totalorder %s124, %s125
      %p134 = scmp.eq.s32.totalorder %s31, 0
      %p135 = por %p133, %p134
      %p136 = scmp.ne.s32.totalorder %s124, %s125
      %p137 = scmp.eq.s32.totalorder %s32, 3
      %p138 = por %p136, %p137
      %p140 = scmp.ne.s32.totalorder %s125, %s139
      %p141 = scmp.eq.s32.totalorder %s32, 0
      %p142 = por %p140, %p141
      %s144 = sadd.s32 %s143, 1
      %p147 = scmp.eq.s32.totalorder %s26, 3
      %p148 = scmp.ne.s32.totalorder %s143, %s145
      %p149 = scmp.eq.s32.totalorder %s26, 0
      %p150 = por %p148, %p149
      %p151 = scmp.ne.s32.totalorder %s143, %s145
      %p152 = scmp.eq.s32.totalorder %s31, 3
      %p153 = por %p151, %p152
      %p154 = scmp.ne.s32.totalorder %s145, %s146
      %p155 = scmp.eq.s32.totalorder %s31, 0
      %p156 = por %p154, %p155
      %p157 = scmp.ne.s32.totalorder %s145, %s146
      %p158 = scmp.eq.s32.totalorder %s32, 3
      %p159 = por %p157, %p158
      %p161 = scmp.ne.s32.totalorder %s146, %s160
      %p162 = scmp.eq.s32.totalorder %s32, 0
      %p163 = por %p161, %p162
      %s165 = sadd.s32 %s164, 1
      %p168 = scmp.eq.s32.totalorder %s26, 3
      %p169 = scmp.ne.s32.totalorder %s164, %s166
      %p170 = scmp.eq.s32.totalorder %s26, 0
      %p171 = por %p169, %p170
      %p172 = scmp.ne.s32.totalorder %s164, %s166
      %p173 = scmp.eq.s32.totalorder %s31, 3
      %p174 = por %p172, %p173
      %p175 = scmp.ne.s32.totalorder %s166, %s167
      %p176 = scmp.eq.s32.totalorder %s31, 0
      %p177 = por %p175, %p176
      %p178 = scmp.ne.s32.totalorder %s166, %s167
      %p179 = scmp.eq.s32.totalorder %s32, 3
      %p180 = por %p178, %p179
      %p182 = scmp.ne.s32.totalorder %s167, %s181
      %p183 = scmp.eq.s32.totalorder %s32, 0
      %p184 = por %p182, %p183
      %s186 = sadd.s32 %s185, 1
      %p189 = scmp.eq.s32.totalorder %s26, 3
      %p190 = scmp.ne.s32.totalorder %s185, %s187
      %p191 = scmp.eq.s32.totalorder %s26, 0
      %p192 = por %p190, %p191
      %p193 = scmp.ne.s32.totalorder %s185, %s187
      %p194 = scmp.eq.s32.totalorder %s31, 3
      %p195 = por %p193, %p194
      %p196 = scmp.ne.s32.totalorder %s187, %s188
      %p197 = scmp.eq.s32.totalorder %s31, 0
      %p198 = por %p196, %p197
      %p199 = scmp.ne.s32.totalorder %s187, %s188
      %p200 = scmp.eq.s32.totalorder %s32, 3
      %p201 = por %p199, %p200
      %p203 = scmp.ne.s32.totalorder %s188, %s202
      %p204 = scmp.eq.s32.totalorder %s32, 0
      %p205 = por %p203, %p204
      %s206 = ssub.s32 %s33, %s45
      %p207 = scmp.eq.s32.totalorder %s206, 0
      %s209 = sadd.s32 %s208, 1
      %s210 = scalar_select %p207, %s208, %s209
      %p213 = pneg %p207
      %p214 = scmp.eq.s32.totalorder %s26, 3
      %p215 = por %p213, %p214
      %p216 = scmp.ne.s32.totalorder %s208, %s211
      %p217 = scmp.eq.s32.totalorder %s26, 0
      %p218 = por %p216, %p217
      %p219 = scmp.ne.s32.totalorder %s208, %s211
      %p220 = scmp.eq.s32.totalorder %s31, 3
      %p221 = por %p219, %p220
      %p222 = scmp.ne.s32.totalorder %s211, %s212
      %p223 = scmp.eq.s32.totalorder %s31, 0
      %p224 = por %p222, %p223
      %p225 = scmp.ne.s32.totalorder %s211, %s212
      %p226 = scmp.eq.s32.totalorder %s32, 3
      %p227 = por %p225, %p226
      %p229 = scmp.ne.s32.totalorder %s212, %s228
      %p230 = scmp.eq.s32.totalorder %s32, 0
      %p231 = por %p229, %p230
      %s232 = ssub.s32 %s33, %s45
      %p233 = scmp.eq.s32.totalorder %s232, 0
      %s235 = sadd.s32 %s234, 1
      %s236 = scalar_select %p233, %s234, %s235
      %p239 = pneg %p233
      %p240 = scmp.eq.s32.totalorder %s26, 3
      %p241 = por %p239, %p240
      %p242 = scmp.ne.s32.totalorder %s234, %s237
      %p243 = scmp.eq.s32.totalorder %s26, 0
      %p244 = por %p242, %p243
      %p245 = scmp.ne.s32.totalorder %s234, %s237
      %p246 = scmp.eq.s32.totalorder %s31, 3
      %p247 = por %p245, %p246
      %p248 = scmp.ne.s32.totalorder %s237, %s238
      %p249 = scmp.eq.s32.totalorder %s31, 0
      %p250 = por %p248, %p249
      %p251 = scmp.ne.s32.totalorder %s237, %s238
      %p252 = scmp.eq.s32.totalorder %s32, 3
      %p253 = por %p251, %p252
      %p255 = scmp.ne.s32.totalorder %s238, %s254
      %p256 = scmp.eq.s32.totalorder %s32, 0
      %p257 = por %p255, %p256
      %p258 = scmp.le.s32.totalorder 1, %s26
      %p259 = scmp.lt.s32.totalorder %s26, 5
      %p260 = pnand %p258, %p259
      %p261 = pneg %p260
      // Predicated region
      $region9: #{tpu_custom_call.1} parent=5 // pred_check
        _
      $region10: #{tpu_custom_call.1} parent=5 // pred_check_branch
        %263 = sbr.rel (%p260) target = $region12
      $region11: #{tpu_custom_call.1} parent=5 // pred_region
        %s264 = ssub.s32 %s26, 1
        // Predicated region
        $region13: #{tpu_custom_call.1} parent=11 // pred_check
          %p265 = pneg %p93
        $region14: #{tpu_custom_call.1} parent=11 // pred_check_branch
          %267 = sbr.rel (%p265) target = $region16
        $region15: #{tpu_custom_call.1} parent=11 // pred_region
          %s269 = ssub.s32 192, 192
          %270 = vsyncadd [#allocation6], %s269
          %s271 = sshll.u32 [#allocation5], 4
          %s272 = int_to_ptr.vmem [resolvable:$true] %s271
          %277 = dma.hbm_to_vmem [thread:$0]  %s1, 192, %s272, [#allocation6], 64, 64, 4
        $region16: #{tpu_custom_call.1} parent=11 // pred_fallthru
          _
        // Predicated region
        $region17: #{tpu_custom_call.1} parent=11 // pred_check
          %p278 = pneg %p114
        $region18: #{tpu_custom_call.1} parent=11 // pred_check_branch
          %280 = sbr.rel (%p278) target = $region20
        $region19: #{tpu_custom_call.1} parent=11 // pred_region
          _
        $region20: #{tpu_custom_call.1} parent=11 // pred_fallthru
          _
        // Predicated region
        $region21: #{tpu_custom_call.1} parent=11 // pred_check
          %p281 = pneg %p135
        $region22: #{tpu_custom_call.1} parent=11 // pred_check_branch
          %283 = sbr.rel (%p281) target = $region24
        $region23: #{tpu_custom_call.1} parent=11 // pred_region
          %s285 = ssub.s32 2048, 2048
          %286 = vsyncadd [#allocation6], %s285
          %s287 = sshll.u32 [#allocation7], 4
          %s288 = int_to_ptr.vmem [resolvable:$true] %s287
          %293 = dma.hbm_to_vmem [thread:$0]  %s3, 2048, %s288, [#allocation6], 128, 128, 8
        $region24: #{tpu_custom_call.1} parent=11 // pred_fallthru
          _
        // Predicated region
        $region25: #{tpu_custom_call.1} parent=11 // pred_check
          %p294 = pneg %p156
        $region26: #{tpu_custom_call.1} parent=11 // pred_check_branch
          %296 = sbr.rel (%p294) target = $region28
        $region27: #{tpu_custom_call.1} parent=11 // pred_region
          _
        $region28: #{tpu_custom_call.1} parent=11 // pred_fallthru
          _
        // Predicated region
        $region29: #{tpu_custom_call.1} parent=11 // pred_check
          %p297 = pneg %p177
        $region30: #{tpu_custom_call.1} parent=11 // pred_check_branch
          %299 = sbr.rel (%p297) target = $region32
        $region31: #{tpu_custom_call.1} parent=11 // pred_region
          %s301 = ssub.s32 2048, 2048
          %302 = vsyncadd [#allocation9], %s301
          %s303 = sshll.u32 [#allocation8], 4
          %s304 = int_to_ptr.vmem [resolvable:$true] %s303
          %309 = dma.hbm_to_vmem [thread:$0]  %s5, 2048, %s304, [#allocation9], 64, 64, 4
        $region32: #{tpu_custom_call.1} parent=11 // pred_fallthru
          _
        // Predicated region
        $region33: #{tpu_custom_call.1} parent=11 // pred_check
          %p310 = pneg %p198
        $region34: #{tpu_custom_call.1} parent=11 // pred_check_branch
          %312 = sbr.rel (%p310) target = $region36
        $region35: #{tpu_custom_call.1} parent=11 // pred_region
          _
        $region36: #{tpu_custom_call.1} parent=11 // pred_fallthru
          _
      $region12: #{tpu_custom_call.1} parent=5 // pred_fallthru
        _
      %p313 = scmp.lt.s32.totalorder %s26, 4
      // Predicated region
      $region37: #{tpu_custom_call.1} parent=5 // pred_check
        %p314 = pneg %p313
      $region38: #{tpu_custom_call.1} parent=5 // pred_check_branch
        %316 = sbr.rel (%p314) target = $region40
      $region39: #{tpu_custom_call.1} parent=5 // pred_region
        // Predicated region
        $region41: #{tpu_custom_call.1} parent=39 // pred_check
          %p317 = pneg %p66
        $region42: #{tpu_custom_call.1} parent=39 // pred_check_branch
          %319 = sbr.rel (%p317) target = $region44
        $region43: #{tpu_custom_call.1} parent=39 // pred_region
          %s320 = sand.u32 %s56, 1
          %s321 = scalar_lea.sflag [#allocation3], %s320
          %s322 = sand.u32 %s56, 1
          %s323 = smul.addr %s322, 4
          %s324 = scalar_lea.vmem [#allocation2], %s323
          %s325 = smul.u32 %s33, 2
          %s326 = sadd.s32 %s325, %s34
          %p327 = scmp.lt.s32.totalorder %s326, 2
          %s328 = scalar_select %p327, %s326, 2
          %s330 = ssub.s32 64, 64
          %331 = vsyncadd %s321, %s330
          %s332 = smul.addr %s328, 64
          %s333 = scalar_lea.hbm %s0, %s332
          %s335 = sshll.u32 %s324, 4
          %s336 = int_to_ptr.vmem [resolvable:$true] %s335
          %338 = dma.hbm_to_vmem [thread:$0]  %s333, 64, %s336, %s321
        $region44: #{tpu_custom_call.1} parent=39 // pred_fallthru
          _
      $region40: #{tpu_custom_call.1} parent=5 // pred_fallthru
        _
      %p339 = scmp.le.s32.totalorder 1, %s26
      %p340 = scmp.lt.s32.totalorder %s26, 5
      %p341 = pnand %p339, %p340
      %p342 = pneg %p341
      // Predicated region
      $region45: #{tpu_custom_call.1} parent=5 // pred_check
        _
      $region46: #{tpu_custom_call.1} parent=5 // pred_check_branch
        %344 = sbr.rel (%p341) target = $region48
      $region47: #{tpu_custom_call.1} parent=5 // pred_region
        %s345 = ssub.s32 %s26, 1
        %s346 = sand.u32 %s59, 1
        %s347 = scalar_lea.sflag [#allocation3], %s346
        %s348 = sand.u32 %s59, 1
        %s349 = smul.addr %s348, 4
        %s350 = scalar_lea.vmem [#allocation2], %s349
        // Predicated region
        $region49: #{tpu_custom_call.1} parent=47 // pred_check
          %p351 = pneg %p72
        $region50: #{tpu_custom_call.1} parent=47 // pred_check_branch
          %353 = sbr.rel (%p351) target = $region52
        $region51: #{tpu_custom_call.1} parent=47 // pred_region
          %354 = dma.done %s347, 64
        $region52: #{tpu_custom_call.1} parent=47 // pred_fallthru
          _
        // Predicated region
        $region53: #{tpu_custom_call.1} parent=47 // pred_check
          %p355 = pneg %p93
        $region54: #{tpu_custom_call.1} parent=47 // pred_check_branch
          %357 = sbr.rel (%p355) target = $region56
        $region55: #{tpu_custom_call.1} parent=47 // pred_region
          %358 = dma.done [#allocation6], 192
        $region56: #{tpu_custom_call.1} parent=47 // pred_fallthru
          _
        // Predicated region
        $region57: #{tpu_custom_call.1} parent=47 // pred_check
          %p359 = pneg %p135
        $region58: #{tpu_custom_call.1} parent=47 // pred_check_branch
          %361 = sbr.rel (%p359) target = $region60
        $region59: #{tpu_custom_call.1} parent=47 // pred_region
          %362 = dma.done [#allocation6], 2048
        $region60: #{tpu_custom_call.1} parent=47 // pred_fallthru
          _
        // Predicated region
        $region61: #{tpu_custom_call.1} parent=47 // pred_check
          %p363 = pneg %p177
        $region62: #{tpu_custom_call.1} parent=47 // pred_check_branch
          %365 = sbr.rel (%p363) target = $region64
        $region63: #{tpu_custom_call.1} parent=47 // pred_region
          %366 = dma.done [#allocation9], 2048
        $region64: #{tpu_custom_call.1} parent=47 // pred_fallthru
          _
        %s367 = sand.u32 %s59, 1
        %s368 = scalar_lea.sflag [#allocation3], %s367
        %s369 = sand.u32 %s59, 1
        %s370 = smul.addr %s369, 4
        %s371 = scalar_lea.vmem [#allocation2], %s370
        %p372 = pneg %p72
        %p373 = pneg %p69
        %p374 = pneg %p93
        %p375 = pneg %p90
        %p376 = pneg %p114
        %p377 = pneg %p111
        %p378 = pneg %p135
        %p379 = pneg %p132
        %p380 = pneg %p156
        %p381 = pneg %p153
        %p382 = pneg %p177
        %p383 = pneg %p174
        %p384 = pneg %p198
        %p385 = pneg %p195
        %p386 = pneg %p224
        %p387 = pneg %p221
        %s388 = sand.u32 %s211, 1
        %s389 = scalar_lea.sflag [#allocation4], %s388
        %s390 = sand.u32 %s211, 1
        %s391 = smul.addr %s390, 8
        %s392 = scalar_lea.vmem [#allocation10], %s391
        %p393 = pneg %p250
        %p394 = pneg %p247
        %s395 = sand.u32 %s237, 1
        %s396 = scalar_lea.sflag [#allocation12], %s395
        %s397 = sand.u32 %s237, 1
        %s398 = smul.addr %s397, 8
        %s399 = scalar_lea.vmem [#allocation11], %s398
        %s400 = smul.u32 %s35, 2
        %s401 = sadd.s32 %s400, %s36
        %p402 = scmp.lt.s32.totalorder %s401, 2
        %s403 = scalar_select %p402, %s401, 2
        %s405 = smul.u32 %s35, 2
        %s406 = sadd.s32 %s405, %s36
        %p407 = scmp.eq.s32.totalorder %s36, 0
        // Predicated region
        $region65: #{tpu_custom_call.1} parent=47 // pred_check
          %p408 = pneg %p407
        $region66: #{tpu_custom_call.1} parent=47 // pred_check_branch
          %410 = sbr.rel (%p408) target = $region68
        $region67: #{tpu_custom_call.1} parent=47 // pred_region
          %411 = vst [vmem:[%s392] sm:$0xff] -1e+30
          %412 = vst [vmem:[%s399] sm:$0xff] 0.0
        $region68: #{tpu_custom_call.1} parent=47 // pred_fallthru
          _
        %v413 = vld [vmem:[%s350] sm:$0xf]
        %v414 = vld [vmem:[#allocation5] sm:$0xf]
        %v415 = vld [vmem:[#allocation5 + $0x4] sm:$0xf]
        %v416 = vld [vmem:[#allocation5 + $0x8] sm:$0x3]
        %v417 = vld [vmem:[%s2] sm:$0x1]
        %v419 = vlaneseq
        %v420 = vshrl.u32 %v419, 7
        %v421 = vsub.s32 0, %v420
        %v422 = vrot.slane %v417, %v421
        %v427 = vunpack.c.l.b16 %v414
        %v428 = vunpack.c.l.b16 %v415
        %v429 = vunpack.c.l.b16 %v416
        %v430 = vpack.c.b16 %v428, %v427
        %v431 = vpack.c.b16 %v429, %v429
        %vm433 = vcmask 154624
        %v435 = vsel %vm433, %v413, 0
        %vm437 = vcmask 1040384
        %vm438 = vcmask 1041408
        %v439 = vsel %vm437, 4294967295, 65535
        %v440 = vsel %vm438, %v439, 0
        %v442 = vand.u32 %v431, %v440
        %444 = vmatprep.subr.bf16.mxu0 0
        %445 = vmatpush1.bf16.msra.mxu0 %v430
        %446 = vmatprep.subr.bf16.mxu0 0
        %447 = vmatpush1.bf16.msra.mxu0 %v442
        %448 = vmatprep.subr.bf16.mxu0 0
        %449 = vmatpush1.bf16.msra.mxu0 0
        %450 = vmatprep.subr.bf16.mxu0 0
        %451 = vmatpush1.bf16.msra.mxu0 0
        %452 = vmatprep.subr.bf16.mxu0 0
        %453 = vmatpush1.bf16.msra.mxu0 0
        %454 = vmatprep.subr.bf16.mxu0 0
        %455 = vmatpush1.bf16.msra.mxu0 0
        %456 = vmatprep.subr.bf16.mxu0 0
        %457 = vmatpush1.bf16.msra.mxu0 0
        %458 = vmatprep.subr.bf16.mxu0 0
        %459 = vmatpush1.bf16.msra.mxu0 0
        %460 = vmatprep.subr.bf16.mxu0 0
        %461 = vmatpush1.bf16.msra.mxu0 0
        %462 = vmatprep.subr.bf16.mxu0 0
        %463 = vmatpush1.bf16.msra.mxu0 0
        %464 = vmatprep.subr.bf16.mxu0 0
        %465 = vmatpush1.bf16.msra.mxu0 0
        %466 = vmatprep.subr.bf16.mxu0 0
        %467 = vmatpush1.bf16.msra.mxu0 0
        %468 = vmatprep.subr.bf16.mxu0 0
        %469 = vmatpush1.bf16.msra.mxu0 0
        %470 = vmatprep.subr.bf16.mxu0 0
        %471 = vmatpush1.bf16.msra.mxu0 0
        %472 = vmatprep.subr.bf16.mxu0 0
        %473 = vmatpush1.bf16.msra.mxu0 0
        %474 = vmatprep.subr.bf16.mxu0 0
        %475 = vmatpush1.bf16.msra.mxu0 0
        %476 = vmatprep.mubr.bf16.mxu0 0
        %477 = vmatmul.mubr.bf16.gmra.mrb[0].mxu0 %v435
        %v478 = vpop.f32.mrb[0].mxu0
        %v479 = vadd.f32 %v422, %v478
        %v480 = vpop.f32.mrb[0].mxu0
        %v481 = vpop.f32.mrb[0].mxu0
        %v482 = vpop.f32.mrb[0].mxu0
        %483 = vdwg.mxu0
        %v484 = vmax.f32 %v479, 0.0
        %v485 = vpack.c.bf16 %v484, %v484
        %v486 = vld [vmem:[#allocation7] sm:$0xff]
        %v487 = vld [vmem:[#allocation7 + $0x8] sm:$0xff]
        %v488 = vld [vmem:[#allocation7 + $0x10] sm:$0xff]
        %v489 = vld [vmem:[#allocation7 + $0x18] sm:$0xff]
        %v490 = vld [vmem:[#allocation7 + $0x20] sm:$0xff]
        %v491 = vld [vmem:[#allocation7 + $0x28] sm:$0xff]
        %v492 = vld [vmem:[#allocation7 + $0x30] sm:$0xff]
        %v493 = vld [vmem:[#allocation7 + $0x38] sm:$0xff]
        %v494 = vld [vmem:[#allocation7 + $0x40] sm:$0xff]
        %v495 = vld [vmem:[#allocation7 + $0x48] sm:$0xff]
        %v496 = vld [vmem:[#allocation7 + $0x50] sm:$0xff]
        %v497 = vld [vmem:[#allocation7 + $0x58] sm:$0xff]
        %v498 = vld [vmem:[#allocation7 + $0x60] sm:$0xff]
        %v499 = vld [vmem:[#allocation7 + $0x68] sm:$0xff]
        %v500 = vld [vmem:[#allocation7 + $0x70] sm:$0xff]
        %v501 = vld [vmem:[#allocation7 + $0x78] sm:$0xff]
        %v502 = vld [vmem:[%s4] sm:$0x3]
        %v504 = vlaneseq
        %v505 = vshrl.u32 %v504, 7
        %v506 = vsub.s32 0, %v505
        %v507 = vrot.slane %v502, %v506
        %v508 = vlaneseq
        %v509 = vshrl.u32 %v508, 7
        %v510 = vsub.s32 1, %v509
        %v511 = vrot.slane %v502, %v510
        %v530 = vunpack.c.l.b16 %v486
        %v531 = vunpack.c.h.b16 %v486
        %v532 = vunpack.c.l.b16 %v487
        %v533 = vunpack.c.h.b16 %v487
        %v534 = vunpack.c.l.b16 %v488
        %v535 = vunpack.c.h.b16 %v488
        %v536 = vunpack.c.l.b16 %v489
        %v537 = vunpack.c.h.b16 %v489
        %v538 = vunpack.c.l.b16 %v490
        %v539 = vunpack.c.h.b16 %v490
        %v540 = vunpack.c.l.b16 %v491
        %v541 = vunpack.c.h.b16 %v491
        %v542 = vunpack.c.l.b16 %v492
        %v543 = vunpack.c.h.b16 %v492
        %v544 = vunpack.c.l.b16 %v493
        %v545 = vunpack.c.h.b16 %v493
        %v546 = vunpack.c.l.b16 %v494
        %v547 = vunpack.c.h.b16 %v494
        %v548 = vunpack.c.l.b16 %v495
        %v549 = vunpack.c.h.b16 %v495
        %v550 = vunpack.c.l.b16 %v496
        %v551 = vunpack.c.h.b16 %v496
        %v552 = vunpack.c.l.b16 %v497
        %v553 = vunpack.c.h.b16 %v497
        %v554 = vunpack.c.l.b16 %v498
        %v555 = vunpack.c.h.b16 %v498
        %v556 = vunpack.c.l.b16 %v499
        %v557 = vunpack.c.h.b16 %v499
        %v558 = vunpack.c.l.b16 %v500
        %v559 = vunpack.c.h.b16 %v500
        %v560 = vunpack.c.l.b16 %v501
        %v561 = vunpack.c.h.b16 %v501
        %v562 = vpack.c.b16 %v532, %v530
        %v563 = vpack.c.b16 %v533, %v531
        %v564 = vpack.c.b16 %v536, %v534
        %v565 = vpack.c.b16 %v537, %v535
        %v566 = vpack.c.b16 %v540, %v538
        %v567 = vpack.c.b16 %v541, %v539
        %v568 = vpack.c.b16 %v544, %v542
        %v569 = vpack.c.b16 %v545, %v543
        %v570 = vpack.c.b16 %v548, %v546
        %v571 = vpack.c.b16 %v549, %v547
        %v572 = vpack.c.b16 %v552, %v550
        %v573 = vpack.c.b16 %v553, %v551
        %v574 = vpack.c.b16 %v556, %v554
        %v575 = vpack.c.b16 %v557, %v555
        %v576 = vpack.c.b16 %v560, %v558
        %v577 = vpack.c.b16 %v561, %v559
        %594 = vmatprep.subr.bf16.mxu0 %v563
        %595 = vmatpush1.bf16.msra.mxu0 %v562
        %596 = vmatprep.subr.bf16.mxu0 %v565
        %597 = vmatpush1.bf16.msra.mxu0 %v564
        %598 = vmatprep.subr.bf16.mxu0 %v567
        %599 = vmatpush1.bf16.msra.mxu0 %v566
        %600 = vmatprep.subr.bf16.mxu0 %v569
        %601 = vmatpush1.bf16.msra.mxu0 %v568
        %602 = vmatprep.subr.bf16.mxu0 %v571
        %603 = vmatpush1.bf16.msra.mxu0 %v570
        %604 = vmatprep.subr.bf16.mxu0 %v573
        %605 = vmatpush1.bf16.msra.mxu0 %v572
        %606 = vmatprep.subr.bf16.mxu0 %v575
        %607 = vmatpush1.bf16.msra.mxu0 %v574
        %608 = vmatprep.subr.bf16.mxu0 %v577
        %609 = vmatpush1.bf16.msra.mxu0 %v576
        %610 = vmatprep.subr.bf16.mxu0 0
        %611 = vmatpush1.bf16.msra.mxu0 0
        %612 = vmatprep.subr.bf16.mxu0 0
        %613 = vmatpush1.bf16.msra.mxu0 0
        %614 = vmatprep.subr.bf16.mxu0 0
        %615 = vmatpush1.bf16.msra.mxu0 0
        %616 = vmatprep.subr.bf16.mxu0 0
        %617 = vmatpush1.bf16.msra.mxu0 0
        %618 = vmatprep.subr.bf16.mxu0 0
        %619 = vmatpush1.bf16.msra.mxu0 0
        %620 = vmatprep.subr.bf16.mxu0 0
        %621 = vmatpush1.bf16.msra.mxu0 0
        %622 = vmatprep.subr.bf16.mxu0 0
        %623 = vmatpush1.bf16.msra.mxu0 0
        %624 = vmatprep.subr.bf16.mxu0 0
        %625 = vmatpush1.bf16.msra.mxu0 0
        %626 = vmatprep.mubr.bf16.mxu0 0
        %627 = vmatmul.mubr.bf16.gmra.mrb[0].mxu0 %v485
        %v628 = vpop.f32.mrb[0].mxu0
        %v629 = vadd.f32 %v507, %v628
        %v630 = vpop.f32.mrb[0].mxu0
        %v631 = vadd.f32 %v511, %v630
        %v632 = vpop.f32.mrb[0].mxu0
        %v633 = vpop.f32.mrb[0].mxu0
        %634 = vdwg.mxu0
        %v635 = vmax.f32 %v629, 0.0
        %v636 = vmax.f32 %v631, 0.0
        %v637 = vpack.c.bf16 %v635, %v635
        %v638 = vpack.c.bf16 %v636, %v636
        %v639 = vld [vmem:[#allocation8] sm:$0xf]
        %v640 = vld [vmem:[#allocation8 + $0x4] sm:$0xf]
        %v641 = vld [vmem:[#allocation8 + $0x8] sm:$0xf]
        %v642 = vld [vmem:[#allocation8 + $0xc] sm:$0xf]
        %v643 = vld [vmem:[#allocation8 + $0x10] sm:$0xf]
        %v644 = vld [vmem:[#allocation8 + $0x14] sm:$0xf]
        %v645 = vld [vmem:[#allocation8 + $0x18] sm:$0xf]
        %v646 = vld [vmem:[#allocation8 + $0x1c] sm:$0xf]
        %v647 = vld [vmem:[#allocation8 + $0x20] sm:$0xf]
        %v648 = vld [vmem:[#allocation8 + $0x24] sm:$0xf]
        %v649 = vld [vmem:[#allocation8 + $0x28] sm:$0xf]
        %v650 = vld [vmem:[#allocation8 + $0x2c] sm:$0xf]
        %v651 = vld [vmem:[#allocation8 + $0x30] sm:$0xf]
        %v652 = vld [vmem:[#allocation8 + $0x34] sm:$0xf]
        %v653 = vld [vmem:[#allocation8 + $0x38] sm:$0xf]
        %v654 = vld [vmem:[#allocation8 + $0x3c] sm:$0xf]
        %v655 = vld [vmem:[#allocation8 + $0x40] sm:$0xf]
        %v656 = vld [vmem:[#allocation8 + $0x44] sm:$0xf]
        %v657 = vld [vmem:[#allocation8 + $0x48] sm:$0xf]
        %v658 = vld [vmem:[#allocation8 + $0x4c] sm:$0xf]
        %v659 = vld [vmem:[#allocation8 + $0x50] sm:$0xf]
        %v660 = vld [vmem:[#allocation8 + $0x54] sm:$0xf]
        %v661 = vld [vmem:[#allocation8 + $0x58] sm:$0xf]
        %v662 = vld [vmem:[#allocation8 + $0x5c] sm:$0xf]
        %v663 = vld [vmem:[#allocation8 + $0x60] sm:$0xf]
        %v664 = vld [vmem:[#allocation8 + $0x64] sm:$0xf]
        %v665 = vld [vmem:[#allocation8 + $0x68] sm:$0xf]
        %v666 = vld [vmem:[#allocation8 + $0x6c] sm:$0xf]
        %v667 = vld [vmem:[#allocation8 + $0x70] sm:$0xf]
        %v668 = vld [vmem:[#allocation8 + $0x74] sm:$0xf]
        %v669 = vld [vmem:[#allocation8 + $0x78] sm:$0xf]
        %v670 = vld [vmem:[#allocation8 + $0x7c] sm:$0xf]
        %v671 = vld [vmem:[%s6] sm:$0x1]
        %v673 = vlaneseq
        %v674 = vshrl.u32 %v673, 7
        %v675 = vsub.s32 0, %v674
        %v676 = vrot.slane %v671, %v675
        %v710 = vunpack.c.l.b16 %v639
        %v711 = vunpack.c.l.b16 %v640
        %v712 = vunpack.c.l.b16 %v641
        %v713 = vunpack.c.l.b16 %v642
        %v714 = vunpack.c.l.b16 %v643
        %v715 = vunpack.c.l.b16 %v644
        %v716 = vunpack.c.l.b16 %v645
        %v717 = vunpack.c.l.b16 %v646
        %v718 = vunpack.c.l.b16 %v647
        %v719 = vunpack.c.l.b16 %v648
        %v720 = vunpack.c.l.b16 %v649
        %v721 = vunpack.c.l.b16 %v650
        %v722 = vunpack.c.l.b16 %v651
        %v723 = vunpack.c.l.b16 %v652
        %v724 = vunpack.c.l.b16 %v653
        %v725 = vunpack.c.l.b16 %v654
        %v726 = vunpack.c.l.b16 %v655
        %v727 = vunpack.c.l.b16 %v656
        %v728 = vunpack.c.l.b16 %v657
        %v729 = vunpack.c.l.b16 %v658
        %v730 = vunpack.c.l.b16 %v659
        %v731 = vunpack.c.l.b16 %v660
        %v732 = vunpack.c.l.b16 %v661
        %v733 = vunpack.c.l.b16 %v662
        %v734 = vunpack.c.l.b16 %v663
        %v735 = vunpack.c.l.b16 %v664
        %v736 = vunpack.c.l.b16 %v665
        %v737 = vunpack.c.l.b16 %v666
        %v738 = vunpack.c.l.b16 %v667
        %v739 = vunpack.c.l.b16 %v668
        %v740 = vunpack.c.l.b16 %v669
        %v741 = vunpack.c.l.b16 %v670
        %v742 = vpack.c.b16 %v711, %v710
        %v743 = vpack.c.b16 %v713, %v712
        %v744 = vpack.c.b16 %v715, %v714
        %v745 = vpack.c.b16 %v717, %v716
        %v746 = vpack.c.b16 %v719, %v718
        %v747 = vpack.c.b16 %v721, %v720
        %v748 = vpack.c.b16 %v723, %v722
        %v749 = vpack.c.b16 %v725, %v724
        %v750 = vpack.c.b16 %v727, %v726
        %v751 = vpack.c.b16 %v729, %v728
        %v752 = vpack.c.b16 %v731, %v730
        %v753 = vpack.c.b16 %v733, %v732
        %v754 = vpack.c.b16 %v735, %v734
        %v755 = vpack.c.b16 %v737, %v736
        %v756 = vpack.c.b16 %v739, %v738
        %v757 = vpack.c.b16 %v741, %v740
        %774 = vmatprep.subr.bf16.mxu0 0
        %775 = vmatpush1.bf16.msra.mxu0 %v742
        %776 = vmatprep.subr.bf16.mxu0 0
        %777 = vmatpush1.bf16.msra.mxu0 %v743
        %778 = vmatprep.subr.bf16.mxu0 0
        %779 = vmatpush1.bf16.msra.mxu0 %v744
        %780 = vmatprep.subr.bf16.mxu0 0
        %781 = vmatpush1.bf16.msra.mxu0 %v745
        %782 = vmatprep.subr.bf16.mxu0 0
        %783 = vmatpush1.bf16.msra.mxu0 %v746
        %784 = vmatprep.subr.bf16.mxu0 0
        %785 = vmatpush1.bf16.msra.mxu0 %v747
        %786 = vmatprep.subr.bf16.mxu0 0
        %787 = vmatpush1.bf16.msra.mxu0 %v748
        %788 = vmatprep.subr.bf16.mxu0 0
        %789 = vmatpush1.bf16.msra.mxu0 %v749
        %790 = vmatprep.subr.bf16.mxu0 0
        %791 = vmatpush1.bf16.msra.mxu0 %v750
        %792 = vmatprep.subr.bf16.mxu0 0
        %793 = vmatpush1.bf16.msra.mxu0 %v751
        %794 = vmatprep.subr.bf16.mxu0 0
        %795 = vmatpush1.bf16.msra.mxu0 %v752
        %796 = vmatprep.subr.bf16.mxu0 0
        %797 = vmatpush1.bf16.msra.mxu0 %v753
        %798 = vmatprep.subr.bf16.mxu0 0
        %799 = vmatpush1.bf16.msra.mxu0 %v754
        %800 = vmatprep.subr.bf16.mxu0 0
        %801 = vmatpush1.bf16.msra.mxu0 %v755
        %802 = vmatprep.subr.bf16.mxu0 0
        %803 = vmatpush1.bf16.msra.mxu0 %v756
        %804 = vmatprep.subr.bf16.mxu0 0
        %805 = vmatpush1.bf16.msra.mxu0 %v757
        %806 = vmatprep.mubr.bf16.mxu0 %v638
        %807 = vmatmul.mubr.bf16.gmra.mrb[0].mxu0 %v637
        %v808 = vpop.f32.mrb[0].mxu0
        %v809 = vadd.f32 %v676, %v808
        %v810 = vpop.f32.mrb[0].mxu0
        %v811 = vpop.f32.mrb[0].mxu0
        %v812 = vpop.f32.mrb[0].mxu0
        %813 = vdwg.mxu0
        %p814 = scmp.lt.s32.totalorder %s406, 2
        // Predicated region
        $region69: #{tpu_custom_call.1} parent=47 // pred_check
          %p815 = pneg %p814
        $region70: #{tpu_custom_call.1} parent=47 // pred_check_branch
          %817 = sbr.rel (%p815) target = $region72
        $region71: #{tpu_custom_call.1} parent=47 // pred_region
          %v818 = vld [vmem:[%s392] sm:$0xff]
          %v819 = vrot.slane %v809, 4
          %v820 = vmax.f32 %v809, %v819
          %v821 = vrot.slane %v820, 2
          %v822 = vmax.f32 %v820, %v821
          %v823 = vrot.slane %v822, 1
          %v824 = vmax.f32 %v822, %v823
          %v825 = vmax.f32 %v818, %v824
          %v826 = vld [vmem:[%s399] sm:$0xff]
          %v827 = vsub.f32 %v818, %v825
          %v828 = vmul.f32 %v827, 1.442695
          %v829 = vpow.pop %v828
          %v830 = vmul.f32 %v826, %v829
          %v831 = vlaneseq
          %v832 = vshrl.u32 %v831, 7
          %v833 = vsub.s32 0, %v832
          %v834 = vrot.slane %v825, %v833
          %v835 = vsub.f32 %v809, %v834
          %v836 = vmul.f32 %v835, 1.442695
          %v837 = vpow.pop %v836
          %v838 = vrot.slane %v837, 4
          %v839 = vadd.f32 %v837, %v838
          %v840 = vrot.slane %v839, 2
          %v841 = vadd.f32 %v839, %v840
          %v842 = vrot.slane %v841, 1
          %v843 = vadd.f32 %v841, %v842
          %v844 = vadd.f32 %v830, %v843
          %845 = vst [vmem:[%s399] sm:$0xff] %v844
          %846 = vst [vmem:[%s392] sm:$0xff] %v825
        $region72: #{tpu_custom_call.1} parent=47 // pred_fallthru
          _
        %p847 = scmp.ge.s32.totalorder %s406, 2
        // Predicated region
        $region73: #{tpu_custom_call.1} parent=47 // pred_check
          %p848 = pneg %p847
        $region74: #{tpu_custom_call.1} parent=47 // pred_check_branch
          %850 = sbr.rel (%p848) target = $region76
        $region75: #{tpu_custom_call.1} parent=47 // pred_region
          %v851 = vlaneseq
          %v852 = vshrl.u32 %v851, 7
          %s853 = smul.u32 %s406, 8
          %v854 = vstv %s853
          %v855 = vadd.s32 %v852, %v854
          %vm856 = vcmp.lt.s32.totalorder %v855, 20
          %v857 = vsel %vm856, 1, 0
          %vm858 = vcmp.eq.s32.totalorder %v857, 1
          %v859 = vsel %vm858, %v809, -1e+30
          %v860 = vld [vmem:[%s392] sm:$0xff]
          %v861 = vrot.slane %v859, 4
          %v862 = vmax.f32 %v859, %v861
          %v863 = vrot.slane %v862, 2
          %v864 = vmax.f32 %v862, %v863
          %v865 = vrot.slane %v864, 1
          %v866 = vmax.f32 %v864, %v865
          %v867 = vmax.f32 %v860, %v866
          %v868 = vld [vmem:[%s399] sm:$0xff]
          %v869 = vsub.f32 %v860, %v867
          %v870 = vmul.f32 %v869, 1.442695
          %v871 = vpow.pop %v870
          %v872 = vmul.f32 %v868, %v871
          %v873 = vlaneseq
          %v874 = vshrl.u32 %v873, 7
          %v875 = vsub.s32 0, %v874
          %v876 = vrot.slane %v867, %v875
          %v877 = vsub.f32 %v859, %v876
          %v878 = vmul.f32 %v877, 1.442695
          %v879 = vpow.pop %v878
          %v880 = vrot.slane %v879, 4
          %v881 = vadd.f32 %v879, %v880
          %v882 = vrot.slane %v881, 2
          %v883 = vadd.f32 %v881, %v882
          %v884 = vrot.slane %v883, 1
          %v885 = vadd.f32 %v883, %v884
          %v886 = vadd.f32 %v872, %v885
          %887 = vst [vmem:[%s399] sm:$0xff] %v886
          %888 = vst [vmem:[%s392] sm:$0xff] %v867
        $region76: #{tpu_custom_call.1} parent=47 // pred_fallthru
          _
        %s889 = sand.u32 %s211, 1
        %s890 = scalar_lea.sflag [#allocation4], %s889
        %s891 = sand.u32 %s211, 1
        %s892 = smul.addr %s891, 8
        %s893 = scalar_lea.vmem [#allocation10], %s892
        %s894 = sand.u32 %s237, 1
        %s895 = scalar_lea.sflag [#allocation12], %s894
        %s896 = sand.u32 %s237, 1
        %s897 = smul.addr %s896, 8
        %s898 = scalar_lea.vmem [#allocation11], %s897
        // Predicated region
        $region77: #{tpu_custom_call.1} parent=47 // pred_check
          %p899 = pneg %p221
        $region78: #{tpu_custom_call.1} parent=47 // pred_check_branch
          %901 = sbr.rel (%p899) target = $region80
        $region79: #{tpu_custom_call.1} parent=47 // pred_region
          %s903 = ssub.s32 128, 128
          %904 = vsyncadd %s890, %s903
          %s905 = smul.addr %s35, 128
          %s906 = scalar_lea.hbm %s7, %s905
          %s908 = sshll.u32 %s893, 4
          %s909 = int_to_ptr.vmem [resolvable:$true] %s908
          %911 = dma.vmem_to_hbm [thread:$0]  %s909, 128, %s906, %s890
        $region80: #{tpu_custom_call.1} parent=47 // pred_fallthru
          _
        // Predicated region
        $region81: #{tpu_custom_call.1} parent=47 // pred_check
          %p912 = pneg %p247
        $region82: #{tpu_custom_call.1} parent=47 // pred_check_branch
          %914 = sbr.rel (%p912) target = $region84
        $region83: #{tpu_custom_call.1} parent=47 // pred_region
          %s916 = ssub.s32 128, 128
          %917 = vsyncadd %s895, %s916
          %s918 = smul.addr %s35, 128
          %s919 = scalar_lea.hbm %s8, %s918
          %s921 = sshll.u32 %s898, 4
          %s922 = int_to_ptr.vmem [resolvable:$true] %s921
          %924 = dma.vmem_to_hbm [thread:$0]  %s922, 128, %s919, %s895
        $region84: #{tpu_custom_call.1} parent=47 // pred_fallthru
          _
      $region48: #{tpu_custom_call.1} parent=5 // pred_fallthru
        _
      %p925 = scmp.le.s32.totalorder 2, %s26
      // Predicated region
      $region85: #{tpu_custom_call.1} parent=5 // pred_check
        %p926 = pneg %p925
      $region86: #{tpu_custom_call.1} parent=5 // pred_check_branch
        %928 = sbr.rel (%p926) target = $region88
      $region87: #{tpu_custom_call.1} parent=5 // pred_region
        %s929 = ssub.s32 %s26, 2
        // Predicated region
        $region89: #{tpu_custom_call.1} parent=87 // pred_check
          %p930 = pneg %p227
        $region90: #{tpu_custom_call.1} parent=87 // pred_check_branch
          %932 = sbr.rel (%p930) target = $region92
        $region91: #{tpu_custom_call.1} parent=87 // pred_region
          %s933 = sand.u32 %s212, 1
          %s934 = scalar_lea.sflag [#allocation4], %s933
          %s935 = sand.u32 %s212, 1
          %s936 = smul.addr %s935, 8
          %s937 = scalar_lea.vmem [#allocation10], %s936
          %938 = dma.done %s934, 128
        $region92: #{tpu_custom_call.1} parent=87 // pred_fallthru
          _
        // Predicated region
        $region93: #{tpu_custom_call.1} parent=87 // pred_check
          %p939 = pneg %p253
        $region94: #{tpu_custom_call.1} parent=87 // pred_check_branch
          %941 = sbr.rel (%p939) target = $region96
        $region95: #{tpu_custom_call.1} parent=87 // pred_region
          %s942 = sand.u32 %s238, 1
          %s943 = scalar_lea.sflag [#allocation12], %s942
          %s944 = sand.u32 %s238, 1
          %s945 = smul.addr %s944, 8
          %s946 = scalar_lea.vmem [#allocation11], %s945
          %947 = dma.done %s943, 128
        $region96: #{tpu_custom_call.1} parent=87 // pred_fallthru
          _
      $region88: #{tpu_custom_call.1} parent=5 // pred_fallthru
        _
    $region6: #{tpu_custom_call.1} parent=1 // loop_footer
      %s30 = sadd.s32 1, %s26
    $region7: #{tpu_custom_call.1} parent=1 // loop_footer_branch
      %25 = sbr.rel target = $region3
    $region8: #{tpu_custom_call.1} parent=1 // loop_exit
      _
    %948 = vsyncpa [#allocation3], 1
    %s949 = scalar_lea.sflag [#allocation3], 1
    %950 = vsyncpa %s949, 1
    %951 = vsyncpa [#allocation6], 1
    %952 = vsyncpa [#allocation9], 1
    %953 = vsyncpa [#allocation4], 1
    %s954 = scalar_lea.sflag [#allocation4], 1
    %955 = vsyncpa %s954, 1
    %956 = vsyncpa [#allocation12], 1
    %s957 = scalar_lea.sflag [#allocation12], 1
    %958 = vsyncpa %s957, 1

</llo_original>
